<compile_context>
chip_gen: v7x
topology: tpu7x:2x2x1
jax: 0.10.0
libtpu: 0.0.40
codegen_flags: <defaults>
</compile_context>

<pallas_src>
import functools

import jax
import jax.numpy as jnp
import numpy as np
from jax.experimental import pallas as pl
from jax.experimental.pallas import tpu as pltpu


@functools.lru_cache(maxsize=None)
def _roll_shift_is_backward():
    """True iff pltpu.roll(x, 1, axis)[i] == x[i-1] (jnp.roll convention).

    The slice-free reflect border needs to know which rotated copy is the
    'previous' neighbour; probe the hardware once and cache the answer."""
    def probe(x_ref, o_ref):
        o_ref[...] = pltpu.roll(x_ref[...], shift=1, axis=0)

    x = jnp.arange(8 * 128, dtype=jnp.float32).reshape(8, 128)
    y = pl.pallas_call(
        probe, out_shape=jax.ShapeDtypeStruct((8, 128), jnp.float32))(x)
    return bool(np.asarray(y)[1, 0] == 0.0)


def _hints_loss_kernel(pred_ref, hints_ref, target_ref, pd_ref, hd_ref,
                       loss_ref, mask_ref, ep_acc, eh_acc,
                       *, C, H, W, recons_rate, hints_rate, roll_backward):
    """Grid = (batch, channel).  Per step:
       pred/hints/target : (1, 1, H, W)  one channel of one batch element
       pd/hd             : (1, 1, H, W)  depth maps (resident across channels)
       loss / mask       : (1, 1, H, W)  outputs (written at the last channel)
       ep_acc / eh_acc   : (H, W) f32    per-channel error accumulators
    """
    C1 = 0.01 ** 2
    C2 = 0.03 ** 2
    c = pl.program_id(1)

    @pl.when(c == 0)
    def _init():
        ep_acc[...] = jnp.zeros_like(ep_acc)
        eh_acc[...] = jnp.zeros_like(eh_acc)

    x = pred_ref[0, 0].astype(jnp.float32)
    h = hints_ref[0, 0].astype(jnp.float32)
    y = target_ref[0, 0].astype(jnp.float32)

    # Boundary masks, hoisted once per grid step as fully pre-broadcast (H, W)
    # tiles; every box filter below reuses them without re-broadcasting.
    row = jax.lax.broadcasted_iota(jnp.int32, (H, W), 0)
    col = jax.lax.broadcasted_iota(jnp.int32, (H, W), 1)
    row_first, row_last = row == 0, row == H - 1
    col_first, col_last = col == 0, col == W - 1

    def _tap3(a, axis, scale=None):
        """3-tap sum along `axis` with reflect(1) boundaries, slice-free.

        interior : a[i-1] + a[i] + a[i+1]
        i == 0   : a[0]   + 2*a[1]      (take the 'next' roll twice)
        i == n-1 : a[n-1] + 2*a[n-2]    (take the 'prev' roll twice)
        The reflected values already live in the rolled tiles, so boundary
        handling costs two vselects (no lane/sublane slices, no broadcasts)."""
        n = H if axis == 0 else W
        first = row_first if axis == 0 else col_first
        last = row_last if axis == 0 else col_last
        r1 = pltpu.roll(a, shift=1, axis=axis)
        r2 = pltpu.roll(a, shift=n - 1, axis=axis)
        prv, nxt = (r1, r2) if roll_backward else (r2, r1)
        out = a + jnp.where(first, nxt, prv) + jnp.where(last, prv, nxt)
        if scale is not None:
            out = out * scale
        return out

    inv9 = np.float32(1.0 / 9.0)

    def box3(a):  # reflect-pad(1) + 3x3 average pool, separable; 1/9 fused in.
        # TODO(synk): optional further win on v6e/v7x: implement box3 as two
        # banded matmuls on the idle MXU (precision=HIGHEST) for small frames.
        return _tap3(_tap3(a, 0), 1, scale=inv9)

    # Target statistics, shared by both SSIM evaluations of this channel.
    mu_y = box3(y)
    mu_y2 = mu_y * mu_y
    sigma_y = box3(y * y) - mu_y2

    def weighted_error(a):
        """0.15 * |a - y| + 0.85 * SSIM-dist(a, y) for one channel."""
        mu_x = box3(a)
        mu_x2 = mu_x * mu_x
        mu_xy = mu_x * mu_y
        sigma_x = box3(a * a) - mu_x2
        sigma_xy = box3(a * y) - mu_xy
        ssim_n = (2.0 * mu_xy + C1) * (2.0 * sigma_xy + C2)
        ssim_d = (mu_x2 + mu_y2 + C1) * (sigma_x + sigma_y + C2)
        # EUP approximate reciprocal + one Newton step: ~1e-7 relative error on
        # the well-conditioned denominator (>= C1*C2 > 0); tolerance is 1e-5.
        r = pl.reciprocal(ssim_d, approx=True)
        r = r * (2.0 - ssim_d * r)
        ssim = jnp.clip((1.0 - ssim_n * r) * 0.5, 0.0, 1.0)
        return 0.15 * jnp.abs(a - y) + 0.85 * ssim

    # Interleave pred & hints for this channel while y's stats are hot.
    ep_acc[...] += weighted_error(x)
    eh_acc[...] += weighted_error(h)

    @pl.when(c == C - 1)
    def _finalize():
        inv_c = np.float32(1.0 / C)
        error_pred = ep_acc[...] * inv_c
        error_hints = eh_acc[...] * inv_c
        hints_mask = jnp.logical_and(error_hints < error_pred + 1e-05,
                                     error_hints < 0.2)
        # TODO(synk): only hints_loss_mode='L1' is implemented; 'berHu' needs a
        # per-batch global max over |pred_depth - hints_depth| (extra scratch
        # reduction) and is not exercised by the default config.
        # TODO(synk): if VMEM gets tight (large frames on v7x), move pd/hd to
        # memory_space=pl.ANY and DMA them into a small scratch only here.
        hints_loss = jnp.abs(pd_ref[0, 0].astype(jnp.float32)
                             - hd_ref[0, 0].astype(jnp.float32))
        loss_ref[0, 0] = (recons_rate * error_pred
                          + hints_rate * hints_mask.astype(jnp.float32)
                          * hints_loss)
        mask_ref[0, 0] = hints_mask.astype(jnp.int32) * 2


def _pick_vmem_limit(est_bytes):
    """Generation-aware scoped-VMEM limit (None = keep the compiler default)."""
    want = int(est_bytes * 1.25)          # headroom: estimate undercounts temps
    if want <= (16 << 20):                # fits even v5e's 16 MiB scoped default
        return None
    try:
        physical = int(pltpu.get_tpu_info().vmem_capacity_bytes)
    except Exception:                      # conservative fallback = v7x (64 MiB)
        physical = 64 << 20
    # Leave ~15% of physical VMEM for compiler-internal scratch / DMA windows.
    return min(want, int(physical * 0.85))


def hints_loss_forward(pred, hints, target, pred_depth, hints_depth,
                       recons_rate=1.0, hints_rate=1.0):
    """JAX/Pallas equivalent of HintsLoss.forward (hints_loss_mode='L1').

    Returns (loss_map [B,1,H,W] f32, hints_mask_int [B,1,H,W] i32)."""
    B, C, H, W = pred.shape
    assert hints.shape == (B, C, H, W) and target.shape == (B, C, H, W)
    assert pred_depth.shape == (B, 1, H, W)
    assert hints_depth.shape == (B, 1, H, W)
    assert H >= 2 and W >= 2  # ReflectionPad2d(1) requirement
    # NOTE: W is the lane axis; for production frame widths prefer W % 128 == 0
    # (pad + mask in the caller) to avoid partially-masked vector stores.

    kernel = functools.partial(
        _hints_loss_kernel, C=C, H=H, W=W,
        recons_rate=float(recons_rate), hints_rate=float(hints_rate),
        roll_backward=_roll_shift_is_backward())

    img_spec = pl.BlockSpec((1, 1, H, W), lambda b, c: (b, c, 0, 0))
    per_b_spec = pl.BlockSpec((1, 1, H, W), lambda b, c: (b, 0, 0, 0))

    grid_spec = pltpu.PrefetchScalarGridSpec(
        num_scalar_prefetch=0,
        grid=(B, C),  # channel axis = in-VMEM reduction (innermost)
        in_specs=[img_spec, img_spec, img_spec, per_b_spec, per_b_spec],
        out_specs=[per_b_spec, per_b_spec],
        scratch_shapes=[pltpu.VMEM((H, W), jnp.float32),
                        pltpu.VMEM((H, W), jnp.float32)],
    )

    # Per-step working-set estimate (bytes).
    px = H * W
    est = px * (3 * 2 * pred.dtype.itemsize          # image channel blocks (x2 buf)
                + 2 * 2 * pred_depth.dtype.itemsize  # depth blocks (x2 buf)
                + 2 * 2 * 4                          # f32 loss + i32 mask blocks
                + 2 * 4                              # channel accumulators
                + 20 * 4)                            # live f32 SSIM temporaries
    vmem_limit = _pick_vmem_limit(est)
    # TODO(synk): for frames whose working set approaches v7x's 64 MiB physical
    # VMEM, add an H-strip grid axis (multiple-of-8 strips, 1-row halo via a
    # manual copy or Element-style index_map) instead of growing the limit, and
    # mark the strip axis "parallel" so both v7x TensorCores get work at B=1.

    loss_map, mask2 = pl.pallas_call(
        kernel,
        out_shape=(jax.ShapeDtypeStruct((B, 1, H, W), jnp.float32),
                   jax.ShapeDtypeStruct((B, 1, H, W), jnp.int32)),
        grid_spec=grid_spec,
        compiler_params=pltpu.CompilerParams(
            dimension_semantics=("parallel", "arbitrary"),
            vmem_limit_bytes=vmem_limit),
    )(pred, hints, target, pred_depth, hints_depth)
    return loss_map, mask2


# ----------------------------- pure-JAX reference --------------------------
def _ref_forward(pred, hints, target, pred_depth, hints_depth,
                 recons_rate=1.0, hints_rate=1.0):
    C1, C2 = 0.01 ** 2, 0.03 ** 2
    B, C, H, W = pred.shape
    refl = lambda a: jnp.pad(a, ((0, 0), (0, 0), (1, 1), (1, 1)), mode="reflect")

    def avg3(a):
        return sum(a[:, :, di:di + H, dj:dj + W]
                   for di in range(3) for dj in range(3)) / 9.0

    def ssim(x, y):
        xp, yp = refl(x), refl(y)
        mu_x, mu_y = avg3(xp), avg3(yp)
        sx = avg3(xp ** 2) - mu_x ** 2
        sy = avg3(yp ** 2) - mu_y ** 2
        sxy = avg3(xp * yp) - mu_x * mu_y
        n = (2 * mu_x * mu_y + C1) * (2 * sxy + C2)
        d = (mu_x ** 2 + mu_y ** 2 + C1) * (sx + sy + C2)
        return jnp.clip((1 - n / d) / 2, 0.0, 1.0)

    def err(a, t):
        return (0.15 * jnp.abs(a - t).mean(1, keepdims=True)
                + 0.85 * ssim(a, t).mean(1, keepdims=True))

    e_pred = err(pred, target)
    e_hints = err(hints, target)
    mask = (e_hints < e_pred + 1e-05) & (e_hints < 0.2)
    h_loss = jnp.abs(pred_depth - hints_depth)
    loss_map = recons_rate * e_pred + hints_rate * mask.astype(jnp.float32) * h_loss
    return loss_map, mask.astype(jnp.int32) * 2


if __name__ == "__main__":
    B, C, H, W = 2, 3, 16, 16
    key = jax.random.PRNGKey(0)
    k1, k2, k3, k4, k5 = jax.random.split(key, 5)
    pred = jax.random.uniform(k1, (B, C, H, W), jnp.float32)
    hints = jax.random.uniform(k2, (B, C, H, W), jnp.float32)
    target = jax.random.uniform(k3, (B, C, H, W), jnp.float32)
    pred_depth = jax.random.uniform(k4, (B, 1, H, W), jnp.float32) * 10.0
    hints_depth = jax.random.uniform(k5, (B, 1, H, W), jnp.float32) * 10.0

    loss_map, mask2 = hints_loss_forward(pred, hints, target,
                                         pred_depth, hints_depth)
    jax.block_until_ready((loss_map, mask2))

    ref_loss, ref_mask = _ref_forward(pred, hints, target,
                                      pred_depth, hints_depth)
    np.testing.assert_allclose(np.asarray(loss_map), np.asarray(ref_loss),
                               rtol=1e-5, atol=1e-5)
    np.testing.assert_array_equal(np.asarray(mask2), np.asarray(ref_mask))

    print("KERNEL_OK")
</pallas_src>

<mosaic_0001>
module attributes {stable_mosaic.version = 11 : i64} {
  func.func @probe(%arg0: memref<8x128xf32, #tpu.memory_space<vmem>>, %arg1: memref<8x128xf32, #tpu.memory_space<vmem>>) attributes {dimension_semantics = [], scalar_prefetch = 0 : i64, scratch_operands = 0 : i64, tpu.core_type = #tpu.core_type<tc>} {
    %c0 = arith.constant 0 : index
    %c0_0 = arith.constant 0 : index
    %0 = vector.load %arg0[%c0, %c0_0] : memref<8x128xf32, #tpu.memory_space<vmem>>, vector<8x128xf32>
    %c1_i32 = arith.constant 1 : i32
    %1 = tpu.dynamic_rotate %0 by %c1_i32 dim 0 : vector<8x128xf32>, i32 -> vector<8x128xf32>
    %c0_1 = arith.constant 0 : index
    %c0_2 = arith.constant 0 : index
    %2 = vector.load %arg1[%c0_1, %c0_2] : memref<8x128xf32, #tpu.memory_space<vmem>>, vector<8x128xf32>
    tpu.vector_store %arg1[%c0_1, %c0_2], %1 {strides = array<i32>} : memref<8x128xf32, #tpu.memory_space<vmem>>, vector<8x128xf32>,
    return
  }
}

</mosaic_0001>

<llo_original>
// kernel: tpu_custom_call.1
$region0: #{tpu_custom_call.1}
  #allocation0 [shape = 'u32[]', space=smem, size = 0x4, offset = 0x4, fixed_abs, tag = 'smem constant byte address 0x4 - core index']
  #allocation1 [shape = 'u32[144,128]{1,0:T(1,128)}', space=vmem, size = 0x12000, scoped, tag = 'internal scratch']
  %s0 = inlined_call_operand.hbm [shape: f32[8,128], index: 0, kind: input, shape index: {}]
  %s1 = inlined_call_operand.hbm [shape: f32[8,128], index: 1, kind: output, shape index: {}]
  %s2 = sld [smem:[#allocation0]]
  $region18: #{tpu_custom_call.1} parent=0
    _
  %s4 = ssub.s32 1, %s2
  %s5 = scalar_select 0, %s4, %s2
  $region1: #{tpu_custom_call.1} parent=0
    #allocation2 [shape = 'u8[4096]{0}', space=vmem, size = 0x1000, scoped, tag = 'input window, operand 0, single buffered']
    #allocation3 [shape = 's32[1]{0}', space=sflag, size = 0x4, scoped, tag = 'scoped memory for tpu_custom_call.1']
    #allocation4 [shape = 's32[1]{0}', space=sflag, size = 0x4, scoped, tag = 'scoped memory for tpu_custom_call.1']
    #allocation5 [shape = 'u8[4096]{0}', space=vmem, size = 0x1000, scoped, tag = 'output window, operand 0, single buffered']
    %6 = vsyncpa [#allocation3], 0
    %7 = vsyncpa [#allocation4], 0
    // Predicated region
    $region2: #{tpu_custom_call.1} parent=1 // pred_check
      _
    $region3: #{tpu_custom_call.1} parent=1 // pred_check_branch
      %9 = sbr.rel (0) target = $region5
    $region4: #{tpu_custom_call.1} parent=1 // pred_region
      %s11 = ssub.s32 128, 128
      %12 = vsyncadd [#allocation3], %s11
      %s14 = sshll.u32 [#allocation2], 4
      %s15 = int_to_ptr.vmem [resolvable:$true] %s14
      %17 = dma.hbm_to_vmem [thread:$0]  %s0, 128, %s15, [#allocation3]
    $region5: #{tpu_custom_call.1} parent=1 // pred_fallthru
      _
    // Predicated region
    $region6: #{tpu_custom_call.1} parent=1 // pred_check
      _
    $region7: #{tpu_custom_call.1} parent=1 // pred_check_branch
      %19 = sbr.rel (0) target = $region9
    $region8: #{tpu_custom_call.1} parent=1 // pred_region
      %20 = dma.done [#allocation3], 128
    $region9: #{tpu_custom_call.1} parent=1 // pred_fallthru
      _
    %v21 = vld [vmem:[#allocation2] sm:$0xff]
    %v22 = vrot.slane %v21, 7
    %23 = vst [vmem:[#allocation5] sm:$0xff] %v22
    // Predicated region
    $region10: #{tpu_custom_call.1} parent=1 // pred_check
      _
    $region11: #{tpu_custom_call.1} parent=1 // pred_check_branch
      %25 = sbr.rel (0) target = $region13
    $region12: #{tpu_custom_call.1} parent=1 // pred_region
      %s27 = ssub.s32 128, 128
      %28 = vsyncadd [#allocation4], %s27
      %s30 = sshll.u32 [#allocation5], 4
      %s31 = int_to_ptr.vmem [resolvable:$true] %s30
      %33 = dma.vmem_to_hbm [thread:$0]  %s31, 128, %s1, [#allocation4]
    $region13: #{tpu_custom_call.1} parent=1 // pred_fallthru
      _
    // Predicated region
    $region14: #{tpu_custom_call.1} parent=1 // pred_check
      _
    $region15: #{tpu_custom_call.1} parent=1 // pred_check_branch
      %35 = sbr.rel (0) target = $region17
    $region16: #{tpu_custom_call.1} parent=1 // pred_region
      %36 = dma.done [#allocation4], 128
    $region17: #{tpu_custom_call.1} parent=1 // pred_fallthru
      _
    %37 = vsyncpa [#allocation3], 1
    %38 = vsyncpa [#allocation4], 1

</llo_original>
